<compile_context>
chip_gen: v7x
topology: tpu7x:2x2x1
jax: 0.10.0
libtpu: 0.0.40
codegen_flags: <defaults>
</compile_context>

<pallas_src>
import functools

import jax
import jax.numpy as jnp
from jax.experimental import pallas as pl
from jax.experimental.pallas import tpu as pltpu


def _round8(n):
    return (n + 7) // 8 * 8


# Row indices inside the shared 8-row "misc" tile of the packed param block.
_R_B1, _R_B2, _R_W3, _R_B3 = 0, 1, 2, 3


def _offsets(input_size, hidden_size):
    """Row offsets of each section inside the packed parameter block."""
    o_w1 = 0
    o_w2 = o_w1 + _round8(input_size)
    o_misc = o_w2 + _round8(hidden_size)
    total = o_misc + 8
    return o_w1, o_w2, o_misc, total


def pack_params(params, input_size, hidden_size):
    """Pack (w1,b1,w2,b2,w3,b3) into one [total_rows, hidden] f32 block."""
    w1, b1, w2, b2, w3, b3 = params
    o_w1, o_w2, o_misc, total = _offsets(input_size, hidden_size)
    p = jnp.zeros((total, hidden_size), jnp.float32)
    p = p.at[o_w1:o_w1 + input_size, :].set(w1)
    p = p.at[o_w2:o_w2 + hidden_size, :].set(w2)
    p = p.at[o_misc + _R_B1, :].set(b1[0])
    p = p.at[o_misc + _R_B2, :].set(b2[0])
    p = p.at[o_misc + _R_W3, :].set(w3[:, 0])        # W3 stored as a row
    p = p.at[o_misc + _R_B3, 0].set(b3[0, 0])        # scalar lives in lane 0
    return p


# ----------------------------- kernel helpers -----------------------------

def _mlp_tail(h1, p_ref, o_w2, o_misc, hidden_size):
    """fc2+ReLU and fc3 given post-ReLU h1 [N, H]; returns [N, 1] f32."""
    w2 = p_ref[o_w2:o_w2 + hidden_size, :].astype(jnp.bfloat16)
    b2 = p_ref[o_misc + _R_B2:o_misc + _R_B2 + 1, :]
    h2 = jnp.dot(h1.astype(jnp.bfloat16), w2,
                 preferred_element_type=jnp.float32) + b2
    h2 = jnp.maximum(h2, 0.0)
    # fc3 output width is 1: VPU multiply + lane (XLU) reduce instead of a
    # 1/256-lane MXU pass.  Tail stays f32 (v5e has no bf16 VPU).
    w3_row = p_ref[o_misc + _R_W3:o_misc + _R_W3 + 1, :]           # [1, H]
    b3 = p_ref[o_misc + _R_B3:o_misc + _R_B3 + 1, :][:, 0:1]       # [1, 1]
    return jnp.sum(h2 * w3_row, axis=-1, keepdims=True) + b3


def _fc1_direct(x, p_ref, o_w1, o_misc, input_size):
    """fc1+ReLU for an explicit [B, input_size] batch; returns [B, H] f32."""
    w1 = p_ref[o_w1:o_w1 + input_size, :].astype(jnp.bfloat16)
    b1 = p_ref[o_misc + _R_B1:o_misc + _R_B1 + 1, :]
    h1 = jnp.dot(x.astype(jnp.bfloat16), w1,
                 preferred_element_type=jnp.float32) + b1
    return jnp.maximum(h1, 0.0)


def _fc1_all_moves(states, p_ref, o_w1, o_misc, state_size, n_actions):
    """fc1+ReLU for the implicit [Ns*A, state_size+1] action batch.

    Rows only differ in the trailing action value, so the [Ns*A, S+1] batch is
    never materialized: the shared state term is one [Ns, H] MXU pass and the
    action term is a broadcast of (iota * W1's action row).
    """
    ns = states.shape[0]
    w1_state = p_ref[o_w1:o_w1 + state_size, :].astype(jnp.bfloat16)
    w1_action = p_ref[o_w1 + state_size:o_w1 + state_size + 1, :]    # [1, H]
    b1 = p_ref[o_misc + _R_B1:o_misc + _R_B1 + 1, :]
    state_h = jnp.dot(states.astype(jnp.bfloat16), w1_state,
                      preferred_element_type=jnp.float32)            # [Ns, H]
    actions = jax.lax.broadcasted_iota(
        jnp.int32, (n_actions, 1), 0).astype(jnp.float32)            # [A, 1]
    action_h = actions * w1_action + b1                              # [A, H]
    h1 = state_h[:, None, :] + action_h[None, :, :]                  # [Ns, A, H]
    h1 = h1.reshape(ns * n_actions, state_h.shape[-1])               # [Ns*A, H]
    return jnp.maximum(h1, 0.0)


# --------------------------------- kernels ---------------------------------

def _forward_kernel(x_ref, p_ref, o_ref, *, input_size, hidden_size):
    o_w1, o_w2, o_misc, _ = _offsets(input_size, hidden_size)
    h1 = _fc1_direct(x_ref[...], p_ref, o_w1, o_misc, input_size)
    o_ref[...] = _mlp_tail(h1, p_ref, o_w2, o_misc, hidden_size)


def _all_moves_kernel(s_ref, p_ref, o_ref, *, state_size, hidden_size,
                      n_actions):
    input_size = state_size + 1
    o_w1, o_w2, o_misc, _ = _offsets(input_size, hidden_size)
    h1 = _fc1_all_moves(s_ref[...], p_ref, o_w1, o_misc, state_size, n_actions)
    o_ref[...] = _mlp_tail(h1, p_ref, o_w2, o_misc, hidden_size)


def _fused_kernel(x_ref, s_ref, p_ref, o_fwd_ref, o_q_ref, *,
                  input_size, hidden_size, n_actions):
    """forward() and forward_all_moves() fused: one launch, one param DMA,
    one shared fc2/fc3 pass over the concatenated h1 batch."""
    state_size = input_size - 1
    o_w1, o_w2, o_misc, _ = _offsets(input_size, hidden_size)
    h1_fwd = _fc1_direct(x_ref[...], p_ref, o_w1, o_misc, input_size)
    h1_mov = _fc1_all_moves(s_ref[...], p_ref, o_w1, o_misc,
                            state_size, n_actions)
    b = h1_fwd.shape[0]
    q = _mlp_tail(jnp.concatenate([h1_fwd, h1_mov], axis=0),
                  p_ref, o_w2, o_misc, hidden_size)
    o_fwd_ref[...] = q[:b, :]
    o_q_ref[...] = q[b:, :]


# -------------------------------- wrappers ---------------------------------

_VMEM = pl.BlockSpec(memory_space=pltpu.MemorySpace.VMEM)


def _flops(n_rows, input_size, hidden_size):
    return 2 * n_rows * (input_size * hidden_size
                         + hidden_size * hidden_size + hidden_size)


def _as_state_batch(step_less_states):
    """[S]-like -> ([1, S], True) ; [Ns, S] -> ([Ns, S], False)."""
    states = jnp.asarray(step_less_states, jnp.float32)
    single = states.ndim != 2
    if single:
        states = states.reshape(1, -1)
    return states, single


def deepnet_forward(x, packed_params):
    """DeepNet.forward. x: [B, input_size] f32. Returns [B, 1] f32."""
    batch, input_size = x.shape
    hidden_size = packed_params.shape[1]
    assert packed_params.shape[0] == _offsets(input_size, hidden_size)[-1], \
        "packed_params was packed for a different input_size/hidden_size"
    cost = pl.CostEstimate(
        flops=_flops(batch, input_size, hidden_size), transcendentals=0,
        bytes_accessed=4 * (x.size + packed_params.size + batch))
    kernel = functools.partial(_forward_kernel, input_size=input_size,
                               hidden_size=hidden_size)
    return pl.pallas_call(
        kernel,
        out_shape=jax.ShapeDtypeStruct((batch, 1), jnp.float32),
        in_specs=[_VMEM, _VMEM],
        out_specs=_VMEM,
        cost_estimate=cost,
    )(x, packed_params)


def forward_all_moves(step_less_states, packed_params, number_of_outputs):
    """DeepNet.forward_all_moves, state-batched.

    step_less_states: [S] (single state, like the PyTorch module) or [Ns, S]
    (batch of states, amortizes launch + param DMA over Ns environments).
    Returns [A, 1] for a single state, [Ns, A, 1] for a batch.
    """
    states, single = _as_state_batch(step_less_states)
    ns, state_size = states.shape
    input_size = state_size + 1
    hidden_size = packed_params.shape[1]
    a = number_of_outputs
    assert packed_params.shape[0] == _offsets(input_size, hidden_size)[-1], \
        "state_size does not match the input_size used in pack_params"
    cost = pl.CostEstimate(
        flops=_flops(ns * a, input_size, hidden_size), transcendentals=0,
        bytes_accessed=4 * (states.size + packed_params.size + ns * a))
    kernel = functools.partial(_all_moves_kernel, state_size=state_size,
                               hidden_size=hidden_size, n_actions=a)
    q = pl.pallas_call(
        kernel,
        out_shape=jax.ShapeDtypeStruct((ns * a, 1), jnp.float32),
        in_specs=[_VMEM, _VMEM],
        out_specs=_VMEM,
        cost_estimate=cost,
    )(states, packed_params)
    q = q.reshape(ns, a, 1)
    return q[0] if single else q


def deepnet_forward_and_all_moves(x, step_less_states, packed_params,
                                  number_of_outputs):
    """Fused forward(x) + forward_all_moves(states) in ONE pallas_call.

    Returns (forward_out [B, 1], q_values [Ns, A, 1] or [A, 1]).
    """
    batch, input_size = x.shape
    states, single = _as_state_batch(step_less_states)
    ns, state_size = states.shape
    hidden_size = packed_params.shape[1]
    a = number_of_outputs
    assert state_size + 1 == input_size, \
        "state_size must equal input_size - 1"
    assert packed_params.shape[0] == _offsets(input_size, hidden_size)[-1], \
        "packed_params was packed for a different input_size/hidden_size"
    n_rows = batch + ns * a
    cost = pl.CostEstimate(
        flops=_flops(n_rows, input_size, hidden_size), transcendentals=0,
        bytes_accessed=4 * (x.size + states.size + packed_params.size + n_rows))
    kernel = functools.partial(_fused_kernel, input_size=input_size,
                               hidden_size=hidden_size, n_actions=a)
    out_fwd, q = pl.pallas_call(
        kernel,
        out_shape=(jax.ShapeDtypeStruct((batch, 1), jnp.float32),
                   jax.ShapeDtypeStruct((ns * a, 1), jnp.float32)),
        in_specs=[_VMEM, _VMEM, _VMEM],
        out_specs=(_VMEM, _VMEM),
        cost_estimate=cost,
    )(x, states, packed_params)
    q = q.reshape(ns, a, 1)
    return out_fwd, (q[0] if single else q)


# ------------------------------ init / reference ----------------------------

def init_params(key, input_size, hidden_size):
    """Deterministic init mirroring nn.Linear shapes; weights stored as [in, out]."""
    k1, k2, k3, k4, k5, k6 = jax.random.split(key, 6)

    def lin(kw, kb, fan_in, fan_out):
        bound = 1.0 / jnp.sqrt(fan_in)
        w = jax.random.uniform(kw, (fan_in, fan_out), jnp.float32, -bound, bound)
        b = jax.random.uniform(kb, (1, fan_out), jnp.float32, -bound, bound)
        return w, b

    w1, b1 = lin(k1, k2, input_size, hidden_size)
    w2, b2 = lin(k3, k4, hidden_size, hidden_size)
    w3, b3 = lin(k5, k6, hidden_size, 1)
    return (w1, b1, w2, b2, w3, b3)


def _reference_forward(x, params):
    w1, b1, w2, b2, w3, b3 = params
    h1 = jnp.maximum(x @ w1 + b1, 0.0)
    h2 = jnp.maximum(h1 @ w2 + b2, 0.0)
    return h2 @ w3 + b3


if __name__ == "__main__":
    key = jax.random.PRNGKey(0)
    kx, kp, ks = jax.random.split(key, 3)

    input_size = 16          # state(15) + action(1) style input
    hidden_size = 32
    number_of_outputs = 8
    batch = 8
    n_states = 2

    params = init_params(kp, input_size, hidden_size)
    packed = pack_params(params, input_size, hidden_size)
    x = jax.random.normal(kx, (batch, input_size), jnp.float32)
    states = jax.random.normal(ks, (n_states, input_size - 1), jnp.float32)

    # MXU operands are bf16 (f32 accumulation) -> compare at bf16-level tolerance.
    tol = dict(atol=5e-2, rtol=5e-2)

    # 1) Fused path: one custom call covers forward() AND batched all-moves.
    out, q = deepnet_forward_and_all_moves(x, states, packed, number_of_outputs)
    out, q = jax.block_until_ready((out, q))

    ref_out = _reference_forward(x, params)
    assert out.shape == (batch, 1)
    assert jnp.allclose(out, ref_out, **tol), float(jnp.abs(out - ref_out).max())

    actions = jnp.arange(number_of_outputs, dtype=jnp.float32)[:, None]
    ref_q = jnp.stack([
        _reference_forward(
            jnp.concatenate(
                [jnp.broadcast_to(s, (number_of_outputs, input_size - 1)),
                 actions], axis=1),
            params)
        for s in states])
    assert q.shape == (n_states, number_of_outputs, 1)
    assert jnp.allclose(q, ref_q, **tol), float(jnp.abs(q - ref_q).max())

    # 2) Standalone forward() path.
    out2 = jax.block_until_ready(deepnet_forward(x, packed))
    assert jnp.allclose(out2, ref_out, **tol), float(jnp.abs(out2 - ref_out).max())

    # 3) Standalone single-state forward_all_moves() (original PyTorch API).
    q_single = jax.block_until_ready(
        forward_all_moves(states[0], packed, number_of_outputs))
    assert q_single.shape == (number_of_outputs, 1)
    assert jnp.allclose(q_single, ref_q[0], **tol), \
        float(jnp.abs(q_single - ref_q[0]).max())

    print("KERNEL_OK")
</pallas_src>

<mosaic_0001>
module attributes {stable_mosaic.version = 11 : i64} {
  func.func @_fused_kernel(%arg0: memref<8x16xf32, #tpu.memory_space<vmem>>, %arg1: memref<2x15xf32, #tpu.memory_space<vmem>>, %arg2: memref<56x32xf32, #tpu.memory_space<vmem>>, %arg3: memref<8x1xf32, #tpu.memory_space<vmem>>, %arg4: memref<16x1xf32, #tpu.memory_space<vmem>>) attributes {dimension_semantics = [], scalar_prefetch = 0 : i64, scratch_operands = 0 : i64, tpu.core_type = #tpu.core_type<tc>} {
    %c0 = arith.constant 0 : index
    %c0_0 = arith.constant 0 : index
    %0 = vector.load %arg0[%c0, %c0_0] : memref<8x16xf32, #tpu.memory_space<vmem>>, vector<8x16xf32>
    %c0_1 = arith.constant 0 : index
    %c0_2 = arith.constant 0 : index
    %1 = vector.load %arg2[%c0_1, %c0_2] : memref<56x32xf32, #tpu.memory_space<vmem>>, vector<16x32xf32>
    %2 = arith.truncf %1 : vector<16x32xf32> to vector<16x32xbf16>
    %c48 = arith.constant 48 : index
    %c0_3 = arith.constant 0 : index
    %3 = vector.load %arg2[%c48, %c0_3] : memref<56x32xf32, #tpu.memory_space<vmem>>, vector<1x32xf32>
    %4 = arith.truncf %0 : vector<8x16xf32> to vector<8x16xbf16>
    %cst = arith.constant dense<0.000000e+00> : vector<8x32xf32>
    %5 = tpu.matmul %4, %2, %cst {dimension_numbers = #tpu.dot_dimension_numbers<[1], [0], [0], [1], [0, 0, 1, 1], [], []>} : vector<8x16xbf16>, vector<16x32xbf16>, vector<8x32xf32> -> vector<8x32xf32>
    %6 = vector.broadcast %3 : vector<1x32xf32> to vector<8x32xf32>
    %7 = arith.addf %5, %6 : vector<8x32xf32>
    %cst_4 = arith.constant 0.000000e+00 : f32
    %8 = vector.broadcast %cst_4 : f32 to vector<8x32xf32>
    %9 = arith.maximumf %7, %8 : vector<8x32xf32>
    %c0_5 = arith.constant 0 : index
    %c0_6 = arith.constant 0 : index
    %10 = vector.load %arg1[%c0_5, %c0_6] : memref<2x15xf32, #tpu.memory_space<vmem>>, vector<2x15xf32>
    %c0_7 = arith.constant 0 : index
    %c0_8 = arith.constant 0 : index
    %11 = vector.load %arg2[%c0_7, %c0_8] : memref<56x32xf32, #tpu.memory_space<vmem>>, vector<15x32xf32>
    %12 = arith.truncf %11 : vector<15x32xf32> to vector<15x32xbf16>
    %c15 = arith.constant 15 : index
    %c0_9 = arith.constant 0 : index
    %13 = vector.load %arg2[%c15, %c0_9] : memref<56x32xf32, #tpu.memory_space<vmem>>, vector<1x32xf32>
    %c48_10 = arith.constant 48 : index
    %c0_11 = arith.constant 0 : index
    %14 = vector.load %arg2[%c48_10, %c0_11] : memref<56x32xf32, #tpu.memory_space<vmem>>, vector<1x32xf32>
    %15 = arith.truncf %10 : vector<2x15xf32> to vector<2x15xbf16>
    %cst_12 = arith.constant dense<0.000000e+00> : vector<2x32xf32>
    %16 = tpu.matmul %15, %12, %cst_12 {dimension_numbers = #tpu.dot_dimension_numbers<[1], [0], [0], [1], [0, 0, 1, 1], [], []>} : vector<2x15xbf16>, vector<15x32xbf16>, vector<2x32xf32> -> vector<2x32xf32>
    %17 = tpu.iota {dimensions = array<i32: 0>} : vector<8x1xi32>
    %18 = arith.sitofp %17 : vector<8x1xi32> to vector<8x1xf32>
    %19 = vector.broadcast %18 : vector<8x1xf32> to vector<8x32xf32>
    %20 = vector.broadcast %13 : vector<1x32xf32> to vector<8x32xf32>
    %21 = arith.mulf %19, %20 : vector<8x32xf32>
    %22 = vector.broadcast %14 : vector<1x32xf32> to vector<8x32xf32>
    %23 = arith.addf %21, %22 : vector<8x32xf32>
    %24 = vector.shape_cast %16 : vector<2x32xf32> to vector<2x1x32xf32>
    %25 = vector.shape_cast %23 : vector<8x32xf32> to vector<1x8x32xf32>
    %26 = vector.broadcast %24 : vector<2x1x32xf32> to vector<2x8x32xf32>
    %27 = vector.broadcast %25 : vector<1x8x32xf32> to vector<2x8x32xf32>
    %28 = arith.addf %26, %27 : vector<2x8x32xf32>
    %29 = vector.shape_cast %28 : vector<2x8x32xf32> to vector<16x32xf32>
    %cst_13 = arith.constant 0.000000e+00 : f32
    %30 = vector.broadcast %cst_13 : f32 to vector<16x32xf32>
    %31 = arith.maximumf %29, %30 : vector<16x32xf32>
    %32 = tpu.concatenate %9, %31 in 0 : vector<8x32xf32>, vector<16x32xf32> -> vector<24x32xf32>
    %c16 = arith.constant 16 : index
    %c0_14 = arith.constant 0 : index
    %33 = vector.load %arg2[%c16, %c0_14] : memref<56x32xf32, #tpu.memory_space<vmem>>, vector<32x32xf32>
    %34 = arith.truncf %33 : vector<32x32xf32> to vector<32x32xbf16>
    %c49 = arith.constant 49 : index
    %c0_15 = arith.constant 0 : index
    %35 = vector.load %arg2[%c49, %c0_15] : memref<56x32xf32, #tpu.memory_space<vmem>>, vector<1x32xf32>
    %36 = arith.truncf %32 : vector<24x32xf32> to vector<24x32xbf16>
    %cst_16 = arith.constant dense<0.000000e+00> : vector<24x32xf32>
    %37 = tpu.matmul %36, %34, %cst_16 {dimension_numbers = #tpu.dot_dimension_numbers<[1], [0], [0], [1], [0, 0, 1, 1], [], []>} : vector<24x32xbf16>, vector<32x32xbf16>, vector<24x32xf32> -> vector<24x32xf32>
    %38 = vector.broadcast %35 : vector<1x32xf32> to vector<24x32xf32>
    %39 = arith.addf %37, %38 : vector<24x32xf32>
    %cst_17 = arith.constant 0.000000e+00 : f32
    %40 = vector.broadcast %cst_17 : f32 to vector<24x32xf32>
    %41 = arith.maximumf %39, %40 : vector<24x32xf32>
    %c50 = arith.constant 50 : index
    %c0_18 = arith.constant 0 : index
    %42 = vector.load %arg2[%c50, %c0_18] : memref<56x32xf32, #tpu.memory_space<vmem>>, vector<1x32xf32>
    %c51 = arith.constant 51 : index
    %c0_19 = arith.constant 0 : index
    %43 = vector.load %arg2[%c51, %c0_19] : memref<56x32xf32, #tpu.memory_space<vmem>>, vector<1x32xf32>
    %44 = vector.extract_strided_slice %43 {offsets = [0, 0], sizes = [1, 1], strides = [1, 1]} : vector<1x32xf32> to vector<1x1xf32>
    %45 = vector.broadcast %42 : vector<1x32xf32> to vector<24x32xf32>
    %46 = arith.mulf %41, %45 : vector<24x32xf32>
    %cst_20 = arith.constant dense<0.000000e+00> : vector<24xf32>
    %47 = vector.multi_reduction <add>, %46, %cst_20 [1] : vector<24x32xf32> to vector<24xf32>
    %48 = vector.shape_cast %47 : vector<24xf32> to vector<24x1xf32>
    %49 = vector.broadcast %44 : vector<1x1xf32> to vector<24x1xf32>
    %50 = arith.addf %48, %49 : vector<24x1xf32>
    %51 = vector.extract_strided_slice %50 {offsets = [0, 0], sizes = [8, 1], strides = [1, 1]} : vector<24x1xf32> to vector<8x1xf32>
    %c0_21 = arith.constant 0 : index
    %c0_22 = arith.constant 0 : index
    %52 = vector.load %arg3[%c0_21, %c0_22] : memref<8x1xf32, #tpu.memory_space<vmem>>, vector<8x1xf32>
    tpu.vector_store %arg3[%c0_21, %c0_22], %51 {strides = array<i32>} : memref<8x1xf32, #tpu.memory_space<vmem>>, vector<8x1xf32>,
    %53 = vector.extract_strided_slice %50 {offsets = [8, 0], sizes = [16, 1], strides = [1, 1]} : vector<24x1xf32> to vector<16x1xf32>
    %c0_23 = arith.constant 0 : index
    %c0_24 = arith.constant 0 : index
    %54 = vector.load %arg4[%c0_23, %c0_24] : memref<16x1xf32, #tpu.memory_space<vmem>>, vector<16x1xf32>
    tpu.vector_store %arg4[%c0_23, %c0_24], %53 {strides = array<i32>} : memref<16x1xf32, #tpu.memory_space<vmem>>, vector<16x1xf32>,
    return
  }
}

</mosaic_0001>

<llo_original>
// kernel: tpu_custom_call.1
$region0: #{tpu_custom_call.1}
  #allocation0 [shape = 'u32[]', space=smem, size = 0x4, offset = 0x4, fixed_abs, tag = 'smem constant byte address 0x4 - core index']
  #allocation1 [shape = 'u32[144,128]{1,0:T(1,128)}', space=vmem, size = 0x12000, scoped, tag = 'internal scratch']
  %s0 = inlined_call_operand.vmem [shape: f32[8,16], index: 0, kind: input, shape index: {}]
  %s1 = inlined_call_operand.vmem [shape: f32[2,15], index: 1, kind: input, shape index: {}]
  %s2 = inlined_call_operand.vmem [shape: f32[56,32], index: 2, kind: input, shape index: {}]
  %s3 = inlined_call_operand.vmem [shape: f32[8,1], index: 3, kind: output, shape index: {0}]
  %s4 = inlined_call_operand.vmem [shape: f32[16,1], index: 4, kind: output, shape index: {1}]
  %5 = xla_tuple %s3, %s4
  %s6 = sld [smem:[#allocation0]]
  $region30: #{tpu_custom_call.1} parent=0
    _
  %s8 = ssub.s32 1, %s6
  %s9 = scalar_select 0, %s8, %s6
  // Predicated region
  $region2: #{tpu_custom_call.1} parent=0 // pred_check
    _
  $region3: #{tpu_custom_call.1} parent=0 // pred_check_branch
    %11 = sbr.rel (0) target = $region5
  $region4: #{tpu_custom_call.1} parent=0 // pred_region
    _
  $region5: #{tpu_custom_call.1} parent=0 // pred_fallthru
    _
  // Predicated region
  $region6: #{tpu_custom_call.1} parent=0 // pred_check
    _
  $region7: #{tpu_custom_call.1} parent=0 // pred_check_branch
    %13 = sbr.rel (0) target = $region9
  $region8: #{tpu_custom_call.1} parent=0 // pred_region
    _
  $region9: #{tpu_custom_call.1} parent=0 // pred_fallthru
    _
  // Predicated region
  $region10: #{tpu_custom_call.1} parent=0 // pred_check
    _
  $region11: #{tpu_custom_call.1} parent=0 // pred_check_branch
    %15 = sbr.rel (0) target = $region13
  $region12: #{tpu_custom_call.1} parent=0 // pred_region
    _
  $region13: #{tpu_custom_call.1} parent=0 // pred_fallthru
    _
  %v17 = vld [vmem:[%s0] sm:$0xff]
  %v18 = vld [vmem:[%s2] sm:$0xff]
  %v19 = vld [vmem:[%s2 + $0x8] sm:$0xff]
  %v20 = vpack.c.bf16 %v19, %v18
  %v21 = vld [vmem:[%s2 + $0x30] sm:$0x1]
  %v22 = vpack.c.bf16 %v17, %v17
  %v23 = vlaneseq
  %v24 = vshrl.u32 %v23, 7
  %v25 = vsub.s32 0, %v24
  %v26 = vrot.slane %v21, %v25
  %vm27 = vcmask 130048
  %v29 = vsel %vm27, %v22, 0
  %31 = vmatprep.subr.bf16.mxu0 0
  %32 = vmatpush1.bf16.msra.mxu0 %v20
  %33 = vmatprep.subr.bf16.mxu0 0
  %34 = vmatpush1.bf16.msra.mxu0 0
  %35 = vmatprep.subr.bf16.mxu0 0
  %36 = vmatpush1.bf16.msra.mxu0 0
  %37 = vmatprep.subr.bf16.mxu0 0
  %38 = vmatpush1.bf16.msra.mxu0 0
  %39 = vmatprep.subr.bf16.mxu0 0
  %40 = vmatpush1.bf16.msra.mxu0 0
  %41 = vmatprep.subr.bf16.mxu0 0
  %42 = vmatpush1.bf16.msra.mxu0 0
  %43 = vmatprep.subr.bf16.mxu0 0
  %44 = vmatpush1.bf16.msra.mxu0 0
  %45 = vmatprep.subr.bf16.mxu0 0
  %46 = vmatpush1.bf16.msra.mxu0 0
  %47 = vmatprep.subr.bf16.mxu0 0
  %48 = vmatpush1.bf16.msra.mxu0 0
  %49 = vmatprep.subr.bf16.mxu0 0
  %50 = vmatpush1.bf16.msra.mxu0 0
  %51 = vmatprep.subr.bf16.mxu0 0
  %52 = vmatpush1.bf16.msra.mxu0 0
  %53 = vmatprep.subr.bf16.mxu0 0
  %54 = vmatpush1.bf16.msra.mxu0 0
  %55 = vmatprep.subr.bf16.mxu0 0
  %56 = vmatpush1.bf16.msra.mxu0 0
  %57 = vmatprep.subr.bf16.mxu0 0
  %58 = vmatpush1.bf16.msra.mxu0 0
  %59 = vmatprep.subr.bf16.mxu0 0
  %60 = vmatpush1.bf16.msra.mxu0 0
  %61 = vmatprep.subr.bf16.mxu0 0
  %62 = vmatpush1.bf16.msra.mxu0 0
  %63 = vmatprep.mubr.bf16.mxu0 0
  %64 = vmatmul.mubr.bf16.gmra.mrb[0].mxu0 %v29
  %v65 = vpop.f32.mrb[0].mxu0
  %v66 = vadd.f32 %v26, %v65
  %v67 = vpop.f32.mrb[0].mxu0
  %v68 = vpop.f32.mrb[0].mxu0
  %v69 = vpop.f32.mrb[0].mxu0
  %70 = vdwg.mxu0
  %v71 = vmax.f32 %v66, 0.0
  %v72 = vld [vmem:[%s1] sm:$0x3]
  %v73 = vld [vmem:[%s2] sm:$0xff]
  %v74 = vld [vmem:[%s2 + $0x8] sm:$0x7f]
  %v75 = vpack.c.bf16 %v74, %v73
  %v76 = vld [vmem:[%s2 + $0xf] sm:$0x1]
  %v77 = vpack.c.bf16 %v72, %v72
  %vm78 = vcmask 121856
  %v80 = vsel %vm78, %v77, 0
  %vm82 = vcmask 1046528
  %vm83 = vcmask 1047552
  %v84 = vsel %vm82, 4294967295, 65535
  %v85 = vsel %vm83, %v84, 0
  %v87 = vand.u32 %v75, %v85
  %89 = vmatprep.subr.bf16.mxu0 0
  %90 = vmatpush1.bf16.msra.mxu0 %v87
  %91 = vmatprep.subr.bf16.mxu0 0
  %92 = vmatpush1.bf16.msra.mxu0 0
  %93 = vmatprep.subr.bf16.mxu0 0
  %94 = vmatpush1.bf16.msra.mxu0 0
  %95 = vmatprep.subr.bf16.mxu0 0
  %96 = vmatpush1.bf16.msra.mxu0 0
  %97 = vmatprep.subr.bf16.mxu0 0
  %98 = vmatpush1.bf16.msra.mxu0 0
  %99 = vmatprep.subr.bf16.mxu0 0
  %100 = vmatpush1.bf16.msra.mxu0 0
  %101 = vmatprep.subr.bf16.mxu0 0
  %102 = vmatpush1.bf16.msra.mxu0 0
  %103 = vmatprep.subr.bf16.mxu0 0
  %104 = vmatpush1.bf16.msra.mxu0 0
  %105 = vmatprep.subr.bf16.mxu0 0
  %106 = vmatpush1.bf16.msra.mxu0 0
  %107 = vmatprep.subr.bf16.mxu0 0
  %108 = vmatpush1.bf16.msra.mxu0 0
  %109 = vmatprep.subr.bf16.mxu0 0
  %110 = vmatpush1.bf16.msra.mxu0 0
  %111 = vmatprep.subr.bf16.mxu0 0
  %112 = vmatpush1.bf16.msra.mxu0 0
  %113 = vmatprep.subr.bf16.mxu0 0
  %114 = vmatpush1.bf16.msra.mxu0 0
  %115 = vmatprep.subr.bf16.mxu0 0
  %116 = vmatpush1.bf16.msra.mxu0 0
  %117 = vmatprep.subr.bf16.mxu0 0
  %118 = vmatpush1.bf16.msra.mxu0 0
  %119 = vmatprep.subr.bf16.mxu0 0
  %120 = vmatpush1.bf16.msra.mxu0 0
  %121 = vmatprep.mubr.bf16.mxu0 0
  %122 = vmatmul.mubr.bf16.gmra.mrb[0].mxu0 %v80
  %v123 = vpop.f32.mrb[0].mxu0
  %v124 = vadd.f32 0.0, %v123
  %v125 = vpop.f32.mrb[0].mxu0
  %v126 = vpop.f32.mrb[0].mxu0
  %v127 = vpop.f32.mrb[0].mxu0
  %128 = vdwg.mxu0
  %v129 = vlaneseq
  %v130 = vshrl.u32 %v129, 7
  %v131 = vcvt.s32.f32 %v130
  %v132 = vlaneseq
  %v133 = vshrl.u32 %v132, 7
  %v134 = vsub.s32 0, %v133
  %v135 = vrot.slane %v76, %v134
  %v136 = vmul.f32 %v131, %v135
  %v137 = vadd.f32 %v136, %v26
  %v140 = vunpack.c.l.s4 1966171168
  %v141 = vunpack.c.0.s8 %v140
  %v142 = vlaneseq
  %v143 = vshrl.u32 %v142, 7
  %v144 = vsub.s32 %v141, %v143
  %v145 = vrot.slane %v124, %v144
  %v146 = vcombine.high %v145, %v145
  %v148 = vunpack.c.l.s4 1966171168
  %v149 = vunpack.c.0.s8 %v148
  %v150 = vlaneseq
  %v151 = vshrl.u32 %v150, 7
  %v152 = vsub.s32 %v149, %v151
  %v153 = vrot.slane %v145, %v152
  %v155 = vunpack.c.l.s4 1966171168
  %v156 = vunpack.c.0.s8 %v155
  %v157 = vlaneseq
  %v158 = vshrl.u32 %v157, 7
  %v159 = vsub.s32 %v156, %v158
  %v160 = vrot.slane %v146, %v159
  %v161 = vlaneseq
  %v162 = vshrl.u32 %v161, 7
  %v163 = vsub.s32 0, %v162
  %v164 = vrot.slane %v153, %v163
  %v165 = vlaneseq
  %v166 = vshrl.u32 %v165, 7
  %v167 = vsub.s32 0, %v166
  %v168 = vrot.slane %v160, %v167
  %v171 = vadd.f32 %v164, %v137
  %v172 = vadd.f32 %v168, %v137
  %v173 = vmax.f32 %v171, 0.0
  %v174 = vmax.f32 %v172, 0.0
  %v175 = vld [vmem:[%s2 + $0x10] sm:$0xff]
  %v176 = vld [vmem:[%s2 + $0x18] sm:$0xff]
  %v177 = vld [vmem:[%s2 + $0x20] sm:$0xff]
  %v178 = vld [vmem:[%s2 + $0x28] sm:$0xff]
  %v179 = vpack.c.bf16 %v176, %v175
  %v180 = vpack.c.bf16 %v178, %v177
  %v181 = vld [vmem:[%s2 + $0x31] sm:$0x1]
  %v182 = vpack.c.bf16 %v173, %v71
  %v183 = vpack.c.bf16 %v174, %v174
  %v184 = vlaneseq
  %v185 = vshrl.u32 %v184, 7
  %v186 = vsub.s32 0, %v185
  %v187 = vrot.slane %v181, %v186
  %vm188 = vcmask 261120
  %v190 = vsel %vm188, %v182, 0
  %v193 = vsel %vm188, %v183, 0
  %195 = vmatprep.subr.bf16.mxu0 0
  %196 = vmatpush1.bf16.msra.mxu0 %v179
  %197 = vmatprep.subr.bf16.mxu0 0
  %198 = vmatpush1.bf16.msra.mxu0 %v180
  %199 = vmatprep.subr.bf16.mxu0 0
  %200 = vmatpush1.bf16.msra.mxu0 0
  %201 = vmatprep.subr.bf16.mxu0 0
  %202 = vmatpush1.bf16.msra.mxu0 0
  %203 = vmatprep.subr.bf16.mxu0 0
  %204 = vmatpush1.bf16.msra.mxu0 0
  %205 = vmatprep.subr.bf16.mxu0 0
  %206 = vmatpush1.bf16.msra.mxu0 0
  %207 = vmatprep.subr.bf16.mxu0 0
  %208 = vmatpush1.bf16.msra.mxu0 0
  %209 = vmatprep.subr.bf16.mxu0 0
  %210 = vmatpush1.bf16.msra.mxu0 0
  %211 = vmatprep.subr.bf16.mxu0 0
  %212 = vmatpush1.bf16.msra.mxu0 0
  %213 = vmatprep.subr.bf16.mxu0 0
  %214 = vmatpush1.bf16.msra.mxu0 0
  %215 = vmatprep.subr.bf16.mxu0 0
  %216 = vmatpush1.bf16.msra.mxu0 0
  %217 = vmatprep.subr.bf16.mxu0 0
  %218 = vmatpush1.bf16.msra.mxu0 0
  %219 = vmatprep.subr.bf16.mxu0 0
  %220 = vmatpush1.bf16.msra.mxu0 0
  %221 = vmatprep.subr.bf16.mxu0 0
  %222 = vmatpush1.bf16.msra.mxu0 0
  %223 = vmatprep.subr.bf16.mxu0 0
  %224 = vmatpush1.bf16.msra.mxu0 0
  %225 = vmatprep.subr.bf16.mxu0 0
  %226 = vmatpush1.bf16.msra.mxu0 0
  %227 = vmatprep.mubr.bf16.mxu0 0
  %228 = vmatmul.mubr.bf16.gmra.mrb[0].mxu0 %v190
  %v229 = vpop.f32.mrb[0].mxu0
  %v230 = vadd.f32 %v187, %v229
  %v231 = vpop.f32.mrb[0].mxu0
  %v232 = vpop.f32.mrb[0].mxu0
  %v233 = vadd.f32 %v187, %v232
  %v234 = vpop.f32.mrb[0].mxu0
  %235 = vmatprep.mubr.bf16.mxu0 0
  %236 = vmatmul.mubr.bf16.gmra.mrb[0].mxu0 %v193
  %v237 = vpop.f32.mrb[0].mxu0
  %v238 = vadd.f32 %v187, %v237
  %v239 = vpop.f32.mrb[0].mxu0
  %v240 = vpop.f32.mrb[0].mxu0
  %v241 = vpop.f32.mrb[0].mxu0
  %242 = vdwg.mxu0
  %v243 = vmax.f32 %v230, 0.0
  %v244 = vmax.f32 %v233, 0.0
  %v245 = vmax.f32 %v238, 0.0
  %v246 = vld [vmem:[%s2 + $0x32] sm:$0x1]
  %v247 = vld [vmem:[%s2 + $0x33] sm:$0x1]
  %v248 = vlaneseq
  %v249 = vshrl.u32 %v248, 7
  %v250 = vsub.s32 0, %v249
  %v251 = vrot.slane %v246, %v250
  %v252 = vmul.f32 %v243, %v251
  %v253 = vmul.f32 %v244, %v251
  %v254 = vmul.f32 %v245, %v251
  %v255 = vsel %vm188, %v252, 0.0
  %256 = vadd.xlane.f32.xlu0 %v255
  %v257 = vpop.xlane.xlu0 %256
  %v258 = vsel %vm188, %v253, 0.0
  %259 = vadd.xlane.f32.xlu0 %v258
  %v260 = vpop.xlane.xlu0 %259
  %v261 = vsel %vm188, %v254, 0.0
  %262 = vadd.xlane.f32.xlu0 %v261
  %v263 = vpop.xlane.xlu0 %262
  %v264 = vlaneseq
  %v265 = vshrl.u32 %v264, 7
  %v266 = vsub.s32 0, %v265
  %v267 = vrot.slane %v247, %v266
  %v268 = vadd.f32 %v257, %v267
  %v269 = vadd.f32 %v260, %v267
  %v270 = vadd.f32 %v263, %v267
  %vm271 = vcmask 7168
  %272 = vst.msk [vmem:[%s3] sm:$0xff] %vm271, %v268
  %273 = vst.msk [vmem:[%s4] sm:$0xff] %vm271, %v269
  %274 = vst.msk [vmem:[%s4 + $0x8] sm:$0xff] %vm271, %v270
  // Predicated region
  $region14: #{tpu_custom_call.1} parent=0 // pred_check
    _
  $region15: #{tpu_custom_call.1} parent=0 // pred_check_branch
    %276 = sbr.rel (0) target = $region17
  $region16: #{tpu_custom_call.1} parent=0 // pred_region
    _
  $region17: #{tpu_custom_call.1} parent=0 // pred_fallthru
    _
  // Predicated region
  $region18: #{tpu_custom_call.1} parent=0 // pred_check
    _
  $region19: #{tpu_custom_call.1} parent=0 // pred_check_branch
    %278 = sbr.rel (0) target = $region21
  $region20: #{tpu_custom_call.1} parent=0 // pred_region
    _
  $region21: #{tpu_custom_call.1} parent=0 // pred_fallthru
    _
  // Predicated region
  $region22: #{tpu_custom_call.1} parent=0 // pred_check
    _
  $region23: #{tpu_custom_call.1} parent=0 // pred_check_branch
    %280 = sbr.rel (0) target = $region25
  $region24: #{tpu_custom_call.1} parent=0 // pred_region
    _
  $region25: #{tpu_custom_call.1} parent=0 // pred_fallthru
    _
  // Predicated region
  $region26: #{tpu_custom_call.1} parent=0 // pred_check
    _
  $region27: #{tpu_custom_call.1} parent=0 // pred_check_branch
    %282 = sbr.rel (0) target = $region29
  $region28: #{tpu_custom_call.1} parent=0 // pred_region
    _
  $region29: #{tpu_custom_call.1} parent=0 // pred_fallthru
    _

</llo_original>
